<compile_context>
chip_gen: v7x
topology: tpu7x:2x2x1
jax: 0.10.0
libtpu: 0.0.40
codegen_flags: <defaults>
</compile_context>

<pallas_src>
import functools

import jax
import jax.numpy as jnp
from jax.experimental import pallas as pl
from jax.experimental.pallas import tpu as pltpu

LN_EPS = 1e-5
LANE = 128


def _round_up(x, m):
    return ((x + m - 1) // m) * m


def _pad2(a, rows, cols):
    return jnp.pad(a, ((0, rows - a.shape[0]), (0, cols - a.shape[1])))


def critic_kernel(x_ref,
                  w1a_ref, b1a_ref, g1a_ref, be1a_ref,
                  w2a_ref, b2a_ref, w3a_ref, b3a_ref,
                  w1b_ref, b1b_ref, g1b_ref, be1b_ref,
                  w2b_ref, b2b_ref, w3b_ref, b3b_ref,
                  q1_ref, q2_ref, *, inv_h):
    x = x_ref[...]                                      # [TB, Dp] bf16

    def qnet(w1, b1, g, be, w2, b2, w3, b3):
        # Linear 1 (MXU: bf16 in, f32 accumulate)
        h = jnp.dot(x, w1[...], preferred_element_type=jnp.float32) + b1[...]
        # LayerNorm over the true H.  Padded hidden columns of h are exactly 0
        # (zero weight cols + zero bias), so sums over the padded width equal
        # sums over H and no lane mask is required.
        mean = jnp.sum(h, axis=-1, keepdims=True) * inv_h
        mean_sq = jnp.sum(h * h, axis=-1, keepdims=True) * inv_h
        var = jnp.maximum(mean_sq - mean * mean, 0.0)
        h = (h - mean) * jax.lax.rsqrt(var + LN_EPS)
        h = h * g[...] + be[...]          # zero-padded gamma/beta re-zero pad cols
        h = jnp.tanh(h)
        # Linear 2 + ReLU
        h = jnp.dot(h.astype(jnp.bfloat16), w2[...],
                    preferred_element_type=jnp.float32) + b2[...]
        h = jnp.maximum(h, 0.0)
        # Output head (padded to a full 128-lane width -> unmasked store)
        q = jnp.dot(h.astype(jnp.bfloat16), w3[...],
                    preferred_element_type=jnp.float32) + b3[...]
        return q

    q1_ref[...] = qnet(w1a_ref, b1a_ref, g1a_ref, be1a_ref,
                       w2a_ref, b2a_ref, w3a_ref, b3a_ref).astype(q1_ref.dtype)
    q2_ref[...] = qnet(w1b_ref, b1b_ref, g1b_ref, be1b_ref,
                       w2b_ref, b2b_ref, w3b_ref, b3b_ref).astype(q2_ref.dtype)


def _prep_head(p, d_pad, h_pad, out_pad):
    """Zero-pad head params to lane-aligned shapes; weights cast to bf16."""
    w1 = _pad2(p["w1"], d_pad, h_pad).astype(jnp.bfloat16)
    b1 = _pad2(p["b1"], 1, h_pad)
    g = _pad2(p["ln_g"], 1, h_pad)
    be = _pad2(p["ln_b"], 1, h_pad)
    w2 = _pad2(p["w2"], h_pad, h_pad).astype(jnp.bfloat16)
    b2 = _pad2(p["b2"], 1, h_pad)
    w3 = _pad2(p["w3"], h_pad, out_pad).astype(jnp.bfloat16)
    b3 = _pad2(p["b3"], 1, out_pad)
    return (w1, b1, g, be, w2, b2, w3, b3)


def critic_forward(obs, action, params, *, tile_b=512):
    """obs: [B, obs_dim] f32, action: [B, action_dim] f32 -> (q1, q2) each [B, 1]."""
    B = obs.shape[0]
    D = obs.shape[1] + action.shape[1]
    H = params["q1"]["w1"].shape[1]
    Dp = _round_up(D, LANE)
    Hp = _round_up(H, LANE)
    OUTP = LANE                            # lane-dense padded output width

    # Host-side concat + zero-pad + bf16 cast (fused layout plumbing in XLA).
    xa = jnp.concatenate([obs, action], axis=-1)
    xa = jnp.pad(xa, ((0, 0), (0, Dp - D))).astype(jnp.bfloat16)

    TB = min(tile_b, _round_up(B, 8))      # largest batch tile that makes sense
    Bp = _round_up(B, TB)
    if Bp != B:
        xa = jnp.pad(xa, ((0, Bp - B), (0, 0)))

    q1w = _prep_head(params["q1"], Dp, Hp, OUTP)
    q2w = _prep_head(params["q2"], Dp, Hp, OUTP)

    x_spec = pl.BlockSpec((TB, Dp), lambda i: (i, 0))
    # Constant index_map -> weights stay resident in VMEM across grid steps.
    w_specs = [pl.BlockSpec(a.shape, lambda i: (0, 0)) for a in (*q1w, *q2w)]
    out_spec = pl.BlockSpec((TB, OUTP), lambda i: (i, 0))

    q1p, q2p = pl.pallas_call(
        functools.partial(critic_kernel, inv_h=1.0 / H),
        out_shape=(jax.ShapeDtypeStruct((Bp, OUTP), jnp.float32),
                   jax.ShapeDtypeStruct((Bp, OUTP), jnp.float32)),
        grid=(Bp // TB,),
        in_specs=[x_spec] + w_specs,
        out_specs=(out_spec, out_spec),
        compiler_params=pltpu.CompilerParams(
            dimension_semantics=("parallel",),        # v7x: shard batch over 2 TCs
            vmem_limit_bytes=32 * 1024 * 1024),
    )(xa, *q1w, *q2w)

    return q1p[:B, :1], q2p[:B, :1]


def _init_head(key, in_dim, hidden_dim, scale=0.1):
    ks = jax.random.split(key, 8)
    # Weights stored [in, out] (transposed vs PyTorch's [out, in]).
    return {
        "w1": scale * jax.random.normal(ks[0], (in_dim, hidden_dim), jnp.float32),
        "b1": scale * jax.random.normal(ks[1], (1, hidden_dim), jnp.float32),
        "ln_g": 1.0 + scale * jax.random.normal(ks[2], (1, hidden_dim), jnp.float32),
        "ln_b": scale * jax.random.normal(ks[3], (1, hidden_dim), jnp.float32),
        "w2": scale * jax.random.normal(ks[4], (hidden_dim, hidden_dim), jnp.float32),
        "b2": scale * jax.random.normal(ks[5], (1, hidden_dim), jnp.float32),
        "w3": scale * jax.random.normal(ks[6], (hidden_dim, 1), jnp.float32),
        "b3": scale * jax.random.normal(ks[7], (1, 1), jnp.float32),
    }


def init_params(key, obs_dim, action_dim, hidden_dim):
    k1, k2 = jax.random.split(key)
    in_dim = obs_dim + action_dim
    return {"q1": _init_head(k1, in_dim, hidden_dim),
            "q2": _init_head(k2, in_dim, hidden_dim)}


def _qnet_ref(xa, p):
    """Pure-JAX reference mirroring the kernel's bf16 MXU casts."""
    bf = lambda t: t.astype(jnp.bfloat16)
    h = jnp.dot(bf(xa), bf(p["w1"]), preferred_element_type=jnp.float32) + p["b1"]
    mean = jnp.mean(h, axis=-1, keepdims=True)
    mean_sq = jnp.mean(h * h, axis=-1, keepdims=True)
    var = jnp.maximum(mean_sq - mean * mean, 0.0)
    h = (h - mean) * jax.lax.rsqrt(var + LN_EPS)
    h = h * p["ln_g"] + p["ln_b"]
    h = jnp.tanh(h)
    h = jnp.dot(bf(h), bf(p["w2"]), preferred_element_type=jnp.float32) + p["b2"]
    h = jnp.maximum(h, 0.0)
    return jnp.dot(bf(h), bf(p["w3"]), preferred_element_type=jnp.float32) + p["b3"]


def critic_forward_ref(obs, action, params):
    xa = jnp.concatenate([obs, action], axis=-1)
    return _qnet_ref(xa, params["q1"]), _qnet_ref(xa, params["q2"])


if __name__ == "__main__":
    B, OBS_DIM, ACTION_DIM, HIDDEN_DIM = 8, 24, 6, 32

    key = jax.random.PRNGKey(0)
    k_obs, k_act, k_par = jax.random.split(key, 3)
    obs = jax.random.normal(k_obs, (B, OBS_DIM), jnp.float32)
    action = jax.random.normal(k_act, (B, ACTION_DIM), jnp.float32)
    params = init_params(k_par, OBS_DIM, ACTION_DIM, HIDDEN_DIM)

    q1, q2 = critic_forward(obs, action, params)
    jax.block_until_ready((q1, q2))

    q1_ref, q2_ref = critic_forward_ref(obs, action, params)
    assert q1.shape == (B, 1) and q2.shape == (B, 1)
    assert jnp.allclose(q1, q1_ref, atol=2e-3, rtol=2e-3)
    assert jnp.allclose(q2, q2_ref, atol=2e-3, rtol=2e-3)

    print("KERNEL_OK")
</pallas_src>

<mosaic_0001>
module attributes {stable_mosaic.version = 11 : i64} {
  func.func @critic_kernel(%arg0: i32, %arg1: memref<8x128xbf16, #tpu.memory_space<vmem>>, %arg2: memref<128x128xbf16, #tpu.memory_space<vmem>>, %arg3: memref<1x128xf32, #tpu.memory_space<vmem>>, %arg4: memref<1x128xf32, #tpu.memory_space<vmem>>, %arg5: memref<1x128xf32, #tpu.memory_space<vmem>>, %arg6: memref<128x128xbf16, #tpu.memory_space<vmem>>, %arg7: memref<1x128xf32, #tpu.memory_space<vmem>>, %arg8: memref<128x128xbf16, #tpu.memory_space<vmem>>, %arg9: memref<1x128xf32, #tpu.memory_space<vmem>>, %arg10: memref<128x128xbf16, #tpu.memory_space<vmem>>, %arg11: memref<1x128xf32, #tpu.memory_space<vmem>>, %arg12: memref<1x128xf32, #tpu.memory_space<vmem>>, %arg13: memref<1x128xf32, #tpu.memory_space<vmem>>, %arg14: memref<128x128xbf16, #tpu.memory_space<vmem>>, %arg15: memref<1x128xf32, #tpu.memory_space<vmem>>, %arg16: memref<128x128xbf16, #tpu.memory_space<vmem>>, %arg17: memref<1x128xf32, #tpu.memory_space<vmem>>, %arg18: memref<8x128xf32, #tpu.memory_space<vmem>>, %arg19: memref<8x128xf32, #tpu.memory_space<vmem>>) attributes {dimension_semantics = [#tpu.dimension_semantics<parallel>], iteration_bounds = array<i64: 1>, scalar_prefetch = 0 : i64, scratch_operands = 0 : i64, tpu.core_type = #tpu.core_type<tc>, window_params = [{transform_indices = @transform_0, window_bounds = array<i64: 8, 128>}, {pipeline_mode = #tpu.pipeline_mode<synchronous>, transform_indices = @transform_1, window_bounds = array<i64: 128, 128>}, {pipeline_mode = #tpu.pipeline_mode<synchronous>, transform_indices = @transform_2, window_bounds = array<i64: 1, 128>}, {pipeline_mode = #tpu.pipeline_mode<synchronous>, transform_indices = @transform_3, window_bounds = array<i64: 1, 128>}, {pipeline_mode = #tpu.pipeline_mode<synchronous>, transform_indices = @transform_4, window_bounds = array<i64: 1, 128>}, {pipeline_mode = #tpu.pipeline_mode<synchronous>, transform_indices = @transform_5, window_bounds = array<i64: 128, 128>}, {pipeline_mode = #tpu.pipeline_mode<synchronous>, transform_indices = @transform_6, window_bounds = array<i64: 1, 128>}, {pipeline_mode = #tpu.pipeline_mode<synchronous>, transform_indices = @transform_7, window_bounds = array<i64: 128, 128>}, {pipeline_mode = #tpu.pipeline_mode<synchronous>, transform_indices = @transform_8, window_bounds = array<i64: 1, 128>}, {pipeline_mode = #tpu.pipeline_mode<synchronous>, transform_indices = @transform_9, window_bounds = array<i64: 128, 128>}, {pipeline_mode = #tpu.pipeline_mode<synchronous>, transform_indices = @transform_10, window_bounds = array<i64: 1, 128>}, {pipeline_mode = #tpu.pipeline_mode<synchronous>, transform_indices = @transform_11, window_bounds = array<i64: 1, 128>}, {pipeline_mode = #tpu.pipeline_mode<synchronous>, transform_indices = @transform_12, window_bounds = array<i64: 1, 128>}, {pipeline_mode = #tpu.pipeline_mode<synchronous>, transform_indices = @transform_13, window_bounds = array<i64: 128, 128>}, {pipeline_mode = #tpu.pipeline_mode<synchronous>, transform_indices = @transform_14, window_bounds = array<i64: 1, 128>}, {pipeline_mode = #tpu.pipeline_mode<synchronous>, transform_indices = @transform_15, window_bounds = array<i64: 128, 128>}, {pipeline_mode = #tpu.pipeline_mode<synchronous>, transform_indices = @transform_16, window_bounds = array<i64: 1, 128>}, {transform_indices = @transform_17, window_bounds = array<i64: 8, 128>}, {transform_indices = @transform_18, window_bounds = array<i64: 8, 128>}]} {
    %c0 = arith.constant 0 : index
    %c0_0 = arith.constant 0 : index
    %0 = vector.load %arg1[%c0, %c0_0] : memref<8x128xbf16, #tpu.memory_space<vmem>>, vector<8x128xbf16>
    %c0_1 = arith.constant 0 : index
    %c0_2 = arith.constant 0 : index
    %1 = vector.load %arg2[%c0_1, %c0_2] : memref<128x128xbf16, #tpu.memory_space<vmem>>, vector<128x128xbf16>
    %cst = arith.constant dense<0.000000e+00> : vector<8x128xf32>
    %2 = tpu.matmul %0, %1, %cst {dimension_numbers = #tpu.dot_dimension_numbers<[1], [0], [0], [1], [0, 0, 1, 1], [], []>} : vector<8x128xbf16>, vector<128x128xbf16>, vector<8x128xf32> -> vector<8x128xf32>
    %c0_3 = arith.constant 0 : index
    %c0_4 = arith.constant 0 : index
    %3 = vector.load %arg3[%c0_3, %c0_4] : memref<1x128xf32, #tpu.memory_space<vmem>>, vector<1x128xf32>
    %4 = vector.broadcast %3 : vector<1x128xf32> to vector<8x128xf32>
    %5 = arith.addf %2, %4 : vector<8x128xf32>
    %cst_5 = arith.constant dense<0.000000e+00> : vector<8xf32>
    %6 = vector.multi_reduction <add>, %5, %cst_5 [1] : vector<8x128xf32> to vector<8xf32>
    %7 = vector.shape_cast %6 : vector<8xf32> to vector<8x1xf32>
    %cst_6 = arith.constant 3.125000e-02 : f32
    %8 = vector.broadcast %cst_6 : f32 to vector<8x1xf32>
    %9 = arith.mulf %7, %8 : vector<8x1xf32>
    %10 = arith.mulf %5, %5 : vector<8x128xf32>
    %cst_7 = arith.constant dense<0.000000e+00> : vector<8xf32>
    %11 = vector.multi_reduction <add>, %10, %cst_7 [1] : vector<8x128xf32> to vector<8xf32>
    %12 = vector.shape_cast %11 : vector<8xf32> to vector<8x1xf32>
    %cst_8 = arith.constant 3.125000e-02 : f32
    %13 = vector.broadcast %cst_8 : f32 to vector<8x1xf32>
    %14 = arith.mulf %12, %13 : vector<8x1xf32>
    %15 = arith.mulf %9, %9 : vector<8x1xf32>
    %16 = arith.subf %14, %15 : vector<8x1xf32>
    %cst_9 = arith.constant 0.000000e+00 : f32
    %17 = vector.broadcast %cst_9 : f32 to vector<8x1xf32>
    %18 = arith.maximumf %16, %17 : vector<8x1xf32>
    %19 = vector.broadcast %9 : vector<8x1xf32> to vector<8x128xf32>
    %20 = arith.subf %5, %19 : vector<8x128xf32>
    %cst_10 = arith.constant 9.99999974E-6 : f32
    %21 = vector.broadcast %cst_10 : f32 to vector<8x1xf32>
    %22 = arith.addf %18, %21 : vector<8x1xf32>
    %23 = math.rsqrt %22 : vector<8x1xf32>
    %24 = vector.broadcast %23 : vector<8x1xf32> to vector<8x128xf32>
    %25 = arith.mulf %20, %24 : vector<8x128xf32>
    %c0_11 = arith.constant 0 : index
    %c0_12 = arith.constant 0 : index
    %26 = vector.load %arg4[%c0_11, %c0_12] : memref<1x128xf32, #tpu.memory_space<vmem>>, vector<1x128xf32>
    %27 = vector.broadcast %26 : vector<1x128xf32> to vector<8x128xf32>
    %28 = arith.mulf %25, %27 : vector<8x128xf32>
    %c0_13 = arith.constant 0 : index
    %c0_14 = arith.constant 0 : index
    %29 = vector.load %arg5[%c0_13, %c0_14] : memref<1x128xf32, #tpu.memory_space<vmem>>, vector<1x128xf32>
    %30 = vector.broadcast %29 : vector<1x128xf32> to vector<8x128xf32>
    %31 = arith.addf %28, %30 : vector<8x128xf32>
    %32 = math.tanh %31 : vector<8x128xf32>
    %33 = arith.truncf %32 : vector<8x128xf32> to vector<8x128xbf16>
    %c0_15 = arith.constant 0 : index
    %c0_16 = arith.constant 0 : index
    %34 = vector.load %arg6[%c0_15, %c0_16] : memref<128x128xbf16, #tpu.memory_space<vmem>>, vector<128x128xbf16>
    %cst_17 = arith.constant dense<0.000000e+00> : vector<8x128xf32>
    %35 = tpu.matmul %33, %34, %cst_17 {dimension_numbers = #tpu.dot_dimension_numbers<[1], [0], [0], [1], [0, 0, 1, 1], [], []>} : vector<8x128xbf16>, vector<128x128xbf16>, vector<8x128xf32> -> vector<8x128xf32>
    %c0_18 = arith.constant 0 : index
    %c0_19 = arith.constant 0 : index
    %36 = vector.load %arg7[%c0_18, %c0_19] : memref<1x128xf32, #tpu.memory_space<vmem>>, vector<1x128xf32>
    %37 = vector.broadcast %36 : vector<1x128xf32> to vector<8x128xf32>
    %38 = arith.addf %35, %37 : vector<8x128xf32>
    %cst_20 = arith.constant 0.000000e+00 : f32
    %39 = vector.broadcast %cst_20 : f32 to vector<8x128xf32>
    %40 = arith.maximumf %38, %39 : vector<8x128xf32>
    %41 = arith.truncf %40 : vector<8x128xf32> to vector<8x128xbf16>
    %c0_21 = arith.constant 0 : index
    %c0_22 = arith.constant 0 : index
    %42 = vector.load %arg8[%c0_21, %c0_22] : memref<128x128xbf16, #tpu.memory_space<vmem>>, vector<128x128xbf16>
    %cst_23 = arith.constant dense<0.000000e+00> : vector<8x128xf32>
    %43 = tpu.matmul %41, %42, %cst_23 {dimension_numbers = #tpu.dot_dimension_numbers<[1], [0], [0], [1], [0, 0, 1, 1], [], []>} : vector<8x128xbf16>, vector<128x128xbf16>, vector<8x128xf32> -> vector<8x128xf32>
    %c0_24 = arith.constant 0 : index
    %c0_25 = arith.constant 0 : index
    %44 = vector.load %arg9[%c0_24, %c0_25] : memref<1x128xf32, #tpu.memory_space<vmem>>, vector<1x128xf32>
    %45 = vector.broadcast %44 : vector<1x128xf32> to vector<8x128xf32>
    %46 = arith.addf %43, %45 : vector<8x128xf32>
    %c0_26 = arith.constant 0 : index
    %c0_27 = arith.constant 0 : index
    %47 = vector.load %arg18[%c0_26, %c0_27] : memref<8x128xf32, #tpu.memory_space<vmem>>, vector<8x128xf32>
    tpu.vector_store %arg18[%c0_26, %c0_27], %46 {strides = array<i32>} : memref<8x128xf32, #tpu.memory_space<vmem>>, vector<8x128xf32>,
    %c0_28 = arith.constant 0 : index
    %c0_29 = arith.constant 0 : index
    %48 = vector.load %arg10[%c0_28, %c0_29] : memref<128x128xbf16, #tpu.memory_space<vmem>>, vector<128x128xbf16>
    %cst_30 = arith.constant dense<0.000000e+00> : vector<8x128xf32>
    %49 = tpu.matmul %0, %48, %cst_30 {dimension_numbers = #tpu.dot_dimension_numbers<[1], [0], [0], [1], [0, 0, 1, 1], [], []>} : vector<8x128xbf16>, vector<128x128xbf16>, vector<8x128xf32> -> vector<8x128xf32>
    %c0_31 = arith.constant 0 : index
    %c0_32 = arith.constant 0 : index
    %50 = vector.load %arg11[%c0_31, %c0_32] : memref<1x128xf32, #tpu.memory_space<vmem>>, vector<1x128xf32>
    %51 = vector.broadcast %50 : vector<1x128xf32> to vector<8x128xf32>
    %52 = arith.addf %49, %51 : vector<8x128xf32>
    %cst_33 = arith.constant dense<0.000000e+00> : vector<8xf32>
    %53 = vector.multi_reduction <add>, %52, %cst_33 [1] : vector<8x128xf32> to vector<8xf32>
    %54 = vector.shape_cast %53 : vector<8xf32> to vector<8x1xf32>
    %cst_34 = arith.constant 3.125000e-02 : f32
    %55 = vector.broadcast %cst_34 : f32 to vector<8x1xf32>
    %56 = arith.mulf %54, %55 : vector<8x1xf32>
    %57 = arith.mulf %52, %52 : vector<8x128xf32>
    %cst_35 = arith.constant dense<0.000000e+00> : vector<8xf32>
    %58 = vector.multi_reduction <add>, %57, %cst_35 [1] : vector<8x128xf32> to vector<8xf32>
    %59 = vector.shape_cast %58 : vector<8xf32> to vector<8x1xf32>
    %cst_36 = arith.constant 3.125000e-02 : f32
    %60 = vector.broadcast %cst_36 : f32 to vector<8x1xf32>
    %61 = arith.mulf %59, %60 : vector<8x1xf32>
    %62 = arith.mulf %56, %56 : vector<8x1xf32>
    %63 = arith.subf %61, %62 : vector<8x1xf32>
    %cst_37 = arith.constant 0.000000e+00 : f32
    %64 = vector.broadcast %cst_37 : f32 to vector<8x1xf32>
    %65 = arith.maximumf %63, %64 : vector<8x1xf32>
    %66 = vector.broadcast %56 : vector<8x1xf32> to vector<8x128xf32>
    %67 = arith.subf %52, %66 : vector<8x128xf32>
    %cst_38 = arith.constant 9.99999974E-6 : f32
    %68 = vector.broadcast %cst_38 : f32 to vector<8x1xf32>
    %69 = arith.addf %65, %68 : vector<8x1xf32>
    %70 = math.rsqrt %69 : vector<8x1xf32>
    %71 = vector.broadcast %70 : vector<8x1xf32> to vector<8x128xf32>
    %72 = arith.mulf %67, %71 : vector<8x128xf32>
    %c0_39 = arith.constant 0 : index
    %c0_40 = arith.constant 0 : index
    %73 = vector.load %arg12[%c0_39, %c0_40] : memref<1x128xf32, #tpu.memory_space<vmem>>, vector<1x128xf32>
    %74 = vector.broadcast %73 : vector<1x128xf32> to vector<8x128xf32>
    %75 = arith.mulf %72, %74 : vector<8x128xf32>
    %c0_41 = arith.constant 0 : index
    %c0_42 = arith.constant 0 : index
    %76 = vector.load %arg13[%c0_41, %c0_42] : memref<1x128xf32, #tpu.memory_space<vmem>>, vector<1x128xf32>
    %77 = vector.broadcast %76 : vector<1x128xf32> to vector<8x128xf32>
    %78 = arith.addf %75, %77 : vector<8x128xf32>
    %79 = math.tanh %78 : vector<8x128xf32>
    %80 = arith.truncf %79 : vector<8x128xf32> to vector<8x128xbf16>
    %c0_43 = arith.constant 0 : index
    %c0_44 = arith.constant 0 : index
    %81 = vector.load %arg14[%c0_43, %c0_44] : memref<128x128xbf16, #tpu.memory_space<vmem>>, vector<128x128xbf16>
    %cst_45 = arith.constant dense<0.000000e+00> : vector<8x128xf32>
    %82 = tpu.matmul %80, %81, %cst_45 {dimension_numbers = #tpu.dot_dimension_numbers<[1], [0], [0], [1], [0, 0, 1, 1], [], []>} : vector<8x128xbf16>, vector<128x128xbf16>, vector<8x128xf32> -> vector<8x128xf32>
    %c0_46 = arith.constant 0 : index
    %c0_47 = arith.constant 0 : index
    %83 = vector.load %arg15[%c0_46, %c0_47] : memref<1x128xf32, #tpu.memory_space<vmem>>, vector<1x128xf32>
    %84 = vector.broadcast %83 : vector<1x128xf32> to vector<8x128xf32>
    %85 = arith.addf %82, %84 : vector<8x128xf32>
    %cst_48 = arith.constant 0.000000e+00 : f32
    %86 = vector.broadcast %cst_48 : f32 to vector<8x128xf32>
    %87 = arith.maximumf %85, %86 : vector<8x128xf32>
    %88 = arith.truncf %87 : vector<8x128xf32> to vector<8x128xbf16>
    %c0_49 = arith.constant 0 : index
    %c0_50 = arith.constant 0 : index
    %89 = vector.load %arg16[%c0_49, %c0_50] : memref<128x128xbf16, #tpu.memory_space<vmem>>, vector<128x128xbf16>
    %cst_51 = arith.constant dense<0.000000e+00> : vector<8x128xf32>
    %90 = tpu.matmul %88, %89, %cst_51 {dimension_numbers = #tpu.dot_dimension_numbers<[1], [0], [0], [1], [0, 0, 1, 1], [], []>} : vector<8x128xbf16>, vector<128x128xbf16>, vector<8x128xf32> -> vector<8x128xf32>
    %c0_52 = arith.constant 0 : index
    %c0_53 = arith.constant 0 : index
    %91 = vector.load %arg17[%c0_52, %c0_53] : memref<1x128xf32, #tpu.memory_space<vmem>>, vector<1x128xf32>
    %92 = vector.broadcast %91 : vector<1x128xf32> to vector<8x128xf32>
    %93 = arith.addf %90, %92 : vector<8x128xf32>
    %c0_54 = arith.constant 0 : index
    %c0_55 = arith.constant 0 : index
    %94 = vector.load %arg19[%c0_54, %c0_55] : memref<8x128xf32, #tpu.memory_space<vmem>>, vector<8x128xf32>
    tpu.vector_store %arg19[%c0_54, %c0_55], %93 {strides = array<i32>} : memref<8x128xf32, #tpu.memory_space<vmem>>, vector<8x128xf32>,
    return
  }
  func.func @transform_0(%arg0: i32) -> (i32, i32) {
    %c0_i32 = arith.constant 0 : i32
    %c0_i32_0 = arith.constant 0 : i32
    return %arg0, %c0_i32 : i32, i32
  }
  func.func @transform_1(%arg0: i32) -> (i32, i32) {
    %c0_i32 = arith.constant 0 : i32
    %c0_i32_0 = arith.constant 0 : i32
    %c0_i32_1 = arith.constant 0 : i32
    return %c0_i32, %c0_i32_0 : i32, i32
  }
  func.func @transform_2(%arg0: i32) -> (i32, i32) {
    %c0_i32 = arith.constant 0 : i32
    %c0_i32_0 = arith.constant 0 : i32
    %c0_i32_1 = arith.constant 0 : i32
    return %c0_i32, %c0_i32_0 : i32, i32
  }
  func.func @transform_3(%arg0: i32) -> (i32, i32) {
    %c0_i32 = arith.constant 0 : i32
    %c0_i32_0 = arith.constant 0 : i32
    %c0_i32_1 = arith.constant 0 : i32
    return %c0_i32, %c0_i32_0 : i32, i32
  }
  func.func @transform_4(%arg0: i32) -> (i32, i32) {
    %c0_i32 = arith.constant 0 : i32
    %c0_i32_0 = arith.constant 0 : i32
    %c0_i32_1 = arith.constant 0 : i32
    return %c0_i32, %c0_i32_0 : i32, i32
  }
  func.func @transform_5(%arg0: i32) -> (i32, i32) {
    %c0_i32 = arith.constant 0 : i32
    %c0_i32_0 = arith.constant 0 : i32
    %c0_i32_1 = arith.constant 0 : i32
    return %c0_i32, %c0_i32_0 : i32, i32
  }
  func.func @transform_6(%arg0: i32) -> (i32, i32) {
    %c0_i32 = arith.constant 0 : i32
    %c0_i32_0 = arith.constant 0 : i32
    %c0_i32_1 = arith.constant 0 : i32
    return %c0_i32, %c0_i32_0 : i32, i32
  }
  func.func @transform_7(%arg0: i32) -> (i32, i32) {
    %c0_i32 = arith.constant 0 : i32
    %c0_i32_0 = arith.constant 0 : i32
    %c0_i32_1 = arith.constant 0 : i32
    return %c0_i32, %c0_i32_0 : i32, i32
  }
  func.func @transform_8(%arg0: i32) -> (i32, i32) {
    %c0_i32 = arith.constant 0 : i32
    %c0_i32_0 = arith.constant 0 : i32
    %c0_i32_1 = arith.constant 0 : i32
    return %c0_i32, %c0_i32_0 : i32, i32
  }
  func.func @transform_9(%arg0: i32) -> (i32, i32) {
    %c0_i32 = arith.constant 0 : i32
    %c0_i32_0 = arith.constant 0 : i32
    %c0_i32_1 = arith.constant 0 : i32
    return %c0_i32, %c0_i32_0 : i32, i32
  }
  func.func @transform_10(%arg0: i32) -> (i32, i32) {
    %c0_i32 = arith.constant 0 : i32
    %c0_i32_0 = arith.constant 0 : i32
    %c0_i32_1 = arith.constant 0 : i32
    return %c0_i32, %c0_i32_0 : i32, i32
  }
  func.func @transform_11(%arg0: i32) -> (i32, i32) {
    %c0_i32 = arith.constant 0 : i32
    %c0_i32_0 = arith.constant 0 : i32
    %c0_i32_1 = arith.constant 0 : i32
    return %c0_i32, %c0_i32_0 : i32, i32
  }
  func.func @transform_12(%arg0: i32) -> (i32, i32) {
    %c0_i32 = arith.constant 0 : i32
    %c0_i32_0 = arith.constant 0 : i32
    %c0_i32_1 = arith.constant 0 : i32
    return %c0_i32, %c0_i32_0 : i32, i32
  }
  func.func @transform_13(%arg0: i32) -> (i32, i32) {
    %c0_i32 = arith.constant 0 : i32
    %c0_i32_0 = arith.constant 0 : i32
    %c0_i32_1 = arith.constant 0 : i32
    return %c0_i32, %c0_i32_0 : i32, i32
  }
  func.func @transform_14(%arg0: i32) -> (i32, i32) {
    %c0_i32 = arith.constant 0 : i32
    %c0_i32_0 = arith.constant 0 : i32
    %c0_i32_1 = arith.constant 0 : i32
    return %c0_i32, %c0_i32_0 : i32, i32
  }
  func.func @transform_15(%arg0: i32) -> (i32, i32) {
    %c0_i32 = arith.constant 0 : i32
    %c0_i32_0 = arith.constant 0 : i32
    %c0_i32_1 = arith.constant 0 : i32
    return %c0_i32, %c0_i32_0 : i32, i32
  }
  func.func @transform_16(%arg0: i32) -> (i32, i32) {
    %c0_i32 = arith.constant 0 : i32
    %c0_i32_0 = arith.constant 0 : i32
    %c0_i32_1 = arith.constant 0 : i32
    return %c0_i32, %c0_i32_0 : i32, i32
  }
  func.func @transform_17(%arg0: i32) -> (i32, i32) {
    %c0_i32 = arith.constant 0 : i32
    %c0_i32_0 = arith.constant 0 : i32
    return %arg0, %c0_i32 : i32, i32
  }
  func.func @transform_18(%arg0: i32) -> (i32, i32) {
    %c0_i32 = arith.constant 0 : i32
    %c0_i32_0 = arith.constant 0 : i32
    return %arg0, %c0_i32 : i32, i32
  }
}

</mosaic_0001>

<llo_original>
// kernel: tpu_custom_call.1
$region0: #{tpu_custom_call.1}
  #allocation0 [shape = 'u32[]', space=smem, size = 0x4, offset = 0x4, fixed_abs, tag = 'smem constant byte address 0x4 - core index']
  #allocation1 [shape = 'u32[144,128]{1,0:T(1,128)}', space=vmem, size = 0x12000, scoped, tag = 'internal scratch']
  %s0 = inlined_call_operand.hbm [shape: bf16[8,128], index: 0, kind: input, shape index: {}]
  %s1 = inlined_call_operand.hbm [shape: bf16[128,128], index: 1, kind: input, shape index: {}]
  %s2 = inlined_call_operand.vmem [shape: f32[1,128], index: 2, kind: input, shape index: {}]
  %s3 = inlined_call_operand.vmem [shape: f32[1,128], index: 3, kind: input, shape index: {}]
  %s4 = inlined_call_operand.vmem [shape: f32[1,128], index: 4, kind: input, shape index: {}]
  %s5 = inlined_call_operand.hbm [shape: bf16[128,128], index: 5, kind: input, shape index: {}]
  %s6 = inlined_call_operand.vmem [shape: f32[1,128], index: 6, kind: input, shape index: {}]
  %s7 = inlined_call_operand.hbm [shape: bf16[128,128], index: 7, kind: input, shape index: {}]
  %s8 = inlined_call_operand.vmem [shape: f32[1,128], index: 8, kind: input, shape index: {}]
  %s9 = inlined_call_operand.hbm [shape: bf16[128,128], index: 9, kind: input, shape index: {}]
  %s10 = inlined_call_operand.vmem [shape: f32[1,128], index: 10, kind: input, shape index: {}]
  %s11 = inlined_call_operand.vmem [shape: f32[1,128], index: 11, kind: input, shape index: {}]
  %s12 = inlined_call_operand.vmem [shape: f32[1,128], index: 12, kind: input, shape index: {}]
  %s13 = inlined_call_operand.hbm [shape: bf16[128,128], index: 13, kind: input, shape index: {}]
  %s14 = inlined_call_operand.vmem [shape: f32[1,128], index: 14, kind: input, shape index: {}]
  %s15 = inlined_call_operand.hbm [shape: bf16[128,128], index: 15, kind: input, shape index: {}]
  %s16 = inlined_call_operand.vmem [shape: f32[1,128], index: 16, kind: input, shape index: {}]
  %s17 = inlined_call_operand.hbm [shape: f32[8,128], index: 17, kind: output, shape index: {0}]
  %s18 = inlined_call_operand.hbm [shape: f32[8,128], index: 18, kind: output, shape index: {1}]
  %19 = xla_tuple %s17, %s18
  %s20 = sld [smem:[#allocation0]]
  $region114: #{tpu_custom_call.1} parent=0
    _
  %s22 = ssub.s32 1, %s20
  %s23 = scalar_select 0, %s22, %s20
  $region1: #{tpu_custom_call.1} parent=0
    #allocation2 [shape = 'u8[2048]{0}', space=vmem, size = 0x800, scoped, tag = 'input window, operand 0, single buffered']
    #allocation3 [shape = 's32[1]{0}', space=sflag, size = 0x4, scoped, tag = 'scoped memory for tpu_custom_call.1']
    #allocation4 [shape = 's32[1]{0}', space=sflag, size = 0x4, scoped, tag = 'scoped memory for tpu_custom_call.1']
    #allocation5 [shape = 'u8[32768]{0}', space=vmem, size = 0x8000, scoped, tag = 'input window, operand 1, single buffered']
    #allocation6 [shape = 's32[1]{0}', space=sflag, size = 0x4, scoped, tag = 'scoped memory for tpu_custom_call.1']
    #allocation7 [shape = 'u8[32768]{0}', space=vmem, size = 0x8000, scoped, tag = 'input window, operand 5, single buffered']
    #allocation8 [shape = 'u8[32768]{0}', space=vmem, size = 0x8000, scoped, tag = 'input window, operand 7, single buffered']
    #allocation9 [shape = 's32[1]{0}', space=sflag, size = 0x4, scoped, tag = 'scoped memory for tpu_custom_call.1']
    #allocation10 [shape = 'u8[32768]{0}', space=vmem, size = 0x8000, scoped, tag = 'input window, operand 9, single buffered']
    #allocation11 [shape = 'u8[32768]{0}', space=vmem, size = 0x8000, scoped, tag = 'input window, operand 13, single buffered']
    #allocation12 [shape = 's32[1]{0}', space=sflag, size = 0x4, scoped, tag = 'scoped memory for tpu_custom_call.1']
    #allocation13 [shape = 'u8[32768]{0}', space=vmem, size = 0x8000, scoped, tag = 'input window, operand 15, single buffered']
    #allocation14 [shape = 'u8[4096]{0}', space=vmem, size = 0x1000, scoped, tag = 'output window, operand 0, single buffered']
    #allocation15 [shape = 'u8[4096]{0}', space=vmem, size = 0x1000, scoped, tag = 'output window, operand 1, single buffered']
    #allocation16 [shape = 's32[1]{0}', space=sflag, size = 0x4, scoped, tag = 'scoped memory for tpu_custom_call.1']
    %24 = vsyncpa [#allocation3], 0
    %25 = vsyncpa [#allocation6], 0
    %26 = vsyncpa [#allocation9], 0
    %27 = vsyncpa [#allocation12], 0
    %28 = vsyncpa [#allocation4], 0
    %29 = vsyncpa [#allocation16], 0
    // Predicated region
    $region2: #{tpu_custom_call.1} parent=1 // pred_check
      _
    $region3: #{tpu_custom_call.1} parent=1 // pred_check_branch
      %31 = sbr.rel (0) target = $region5
    $region4: #{tpu_custom_call.1} parent=1 // pred_region
      %s33 = ssub.s32 64, 64
      %34 = vsyncadd [#allocation3], %s33
      %s36 = sshll.u32 [#allocation2], 4
      %s37 = int_to_ptr.vmem [resolvable:$true] %s36
      %39 = dma.hbm_to_vmem [thread:$0]  %s0, 64, %s37, [#allocation3]
    $region5: #{tpu_custom_call.1} parent=1 // pred_fallthru
      _
    // Predicated region
    $region6: #{tpu_custom_call.1} parent=1 // pred_check
      _
    $region7: #{tpu_custom_call.1} parent=1 // pred_check_branch
      %41 = sbr.rel (0) target = $region9
    $region8: #{tpu_custom_call.1} parent=1 // pred_region
      %s43 = ssub.s32 1024, 1024
      %44 = vsyncadd [#allocation6], %s43
      %s45 = sshll.u32 [#allocation5], 4
      %s46 = int_to_ptr.vmem [resolvable:$true] %s45
      %51 = dma.hbm_to_vmem [thread:$0]  %s1, 1024, %s46, [#allocation6], 64, 64, 4
    $region9: #{tpu_custom_call.1} parent=1 // pred_fallthru
      _
    // Predicated region
    $region10: #{tpu_custom_call.1} parent=1 // pred_check
      _
    $region11: #{tpu_custom_call.1} parent=1 // pred_check_branch
      %53 = sbr.rel (0) target = $region13
    $region12: #{tpu_custom_call.1} parent=1 // pred_region
      _
    $region13: #{tpu_custom_call.1} parent=1 // pred_fallthru
      _
    // Predicated region
    $region14: #{tpu_custom_call.1} parent=1 // pred_check
      _
    $region15: #{tpu_custom_call.1} parent=1 // pred_check_branch
      %55 = sbr.rel (0) target = $region17
    $region16: #{tpu_custom_call.1} parent=1 // pred_region
      _
    $region17: #{tpu_custom_call.1} parent=1 // pred_fallthru
      _
    // Predicated region
    $region18: #{tpu_custom_call.1} parent=1 // pred_check
      _
    $region19: #{tpu_custom_call.1} parent=1 // pred_check_branch
      %57 = sbr.rel (0) target = $region21
    $region20: #{tpu_custom_call.1} parent=1 // pred_region
      _
    $region21: #{tpu_custom_call.1} parent=1 // pred_fallthru
      _
    // Predicated region
    $region22: #{tpu_custom_call.1} parent=1 // pred_check
      _
    $region23: #{tpu_custom_call.1} parent=1 // pred_check_branch
      %59 = sbr.rel (0) target = $region25
    $region24: #{tpu_custom_call.1} parent=1 // pred_region
      %s61 = ssub.s32 1024, 1024
      %62 = vsyncadd [#allocation6], %s61
      %s63 = sshll.u32 [#allocation7], 4
      %s64 = int_to_ptr.vmem [resolvable:$true] %s63
      %69 = dma.hbm_to_vmem [thread:$0]  %s5, 1024, %s64, [#allocation6], 64, 64, 4
    $region25: #{tpu_custom_call.1} parent=1 // pred_fallthru
      _
    // Predicated region
    $region26: #{tpu_custom_call.1} parent=1 // pred_check
      _
    $region27: #{tpu_custom_call.1} parent=1 // pred_check_branch
      %71 = sbr.rel (0) target = $region29
    $region28: #{tpu_custom_call.1} parent=1 // pred_region
      _
    $region29: #{tpu_custom_call.1} parent=1 // pred_fallthru
      _
    // Predicated region
    $region30: #{tpu_custom_call.1} parent=1 // pred_check
      _
    $region31: #{tpu_custom_call.1} parent=1 // pred_check_branch
      %73 = sbr.rel (0) target = $region33
    $region32: #{tpu_custom_call.1} parent=1 // pred_region
      %s75 = ssub.s32 1024, 1024
      %76 = vsyncadd [#allocation9], %s75
      %s77 = sshll.u32 [#allocation8], 4
      %s78 = int_to_ptr.vmem [resolvable:$true] %s77
      %83 = dma.hbm_to_vmem [thread:$0]  %s7, 1024, %s78, [#allocation9], 64, 64, 4
    $region33: #{tpu_custom_call.1} parent=1 // pred_fallthru
      _
    // Predicated region
    $region34: #{tpu_custom_call.1} parent=1 // pred_check
      _
    $region35: #{tpu_custom_call.1} parent=1 // pred_check_branch
      %85 = sbr.rel (0) target = $region37
    $region36: #{tpu_custom_call.1} parent=1 // pred_region
      _
    $region37: #{tpu_custom_call.1} parent=1 // pred_fallthru
      _
    // Predicated region
    $region38: #{tpu_custom_call.1} parent=1 // pred_check
      _
    $region39: #{tpu_custom_call.1} parent=1 // pred_check_branch
      %87 = sbr.rel (0) target = $region41
    $region40: #{tpu_custom_call.1} parent=1 // pred_region
      %s89 = ssub.s32 1024, 1024
      %90 = vsyncadd [#allocation9], %s89
      %s91 = sshll.u32 [#allocation10], 4
      %s92 = int_to_ptr.vmem [resolvable:$true] %s91
      %97 = dma.hbm_to_vmem [thread:$0]  %s9, 1024, %s92, [#allocation9], 64, 64, 4
    $region41: #{tpu_custom_call.1} parent=1 // pred_fallthru
      _
    // Predicated region
    $region42: #{tpu_custom_call.1} parent=1 // pred_check
      _
    $region43: #{tpu_custom_call.1} parent=1 // pred_check_branch
      %99 = sbr.rel (0) target = $region45
    $region44: #{tpu_custom_call.1} parent=1 // pred_region
      _
    $region45: #{tpu_custom_call.1} parent=1 // pred_fallthru
      _
    // Predicated region
    $region46: #{tpu_custom_call.1} parent=1 // pred_check
      _
    $region47: #{tpu_custom_call.1} parent=1 // pred_check_branch
      %101 = sbr.rel (0) target = $region49
    $region48: #{tpu_custom_call.1} parent=1 // pred_region
      _
    $region49: #{tpu_custom_call.1} parent=1 // pred_fallthru
      _
    // Predicated region
    $region50: #{tpu_custom_call.1} parent=1 // pred_check
      _
    $region51: #{tpu_custom_call.1} parent=1 // pred_check_branch
      %103 = sbr.rel (0) target = $region53
    $region52: #{tpu_custom_call.1} parent=1 // pred_region
      _
    $region53: #{tpu_custom_call.1} parent=1 // pred_fallthru
      _
    // Predicated region
    $region54: #{tpu_custom_call.1} parent=1 // pred_check
      _
    $region55: #{tpu_custom_call.1} parent=1 // pred_check_branch
      %105 = sbr.rel (0) target = $region57
    $region56: #{tpu_custom_call.1} parent=1 // pred_region
      %s107 = ssub.s32 1024, 1024
      %108 = vsyncadd [#allocation12], %s107
      %s109 = sshll.u32 [#allocation11], 4
      %s110 = int_to_ptr.vmem [resolvable:$true] %s109
      %115 = dma.hbm_to_vmem [thread:$0]  %s13, 1024, %s110, [#allocation12], 64, 64, 4
    $region57: #{tpu_custom_call.1} parent=1 // pred_fallthru
      _
    // Predicated region
    $region58: #{tpu_custom_call.1} parent=1 // pred_check
      _
    $region59: #{tpu_custom_call.1} parent=1 // pred_check_branch
      %117 = sbr.rel (0) target = $region61
    $region60: #{tpu_custom_call.1} parent=1 // pred_region
      _
    $region61: #{tpu_custom_call.1} parent=1 // pred_fallthru
      _
    // Predicated region
    $region62: #{tpu_custom_call.1} parent=1 // pred_check
      _
    $region63: #{tpu_custom_call.1} parent=1 // pred_check_branch
      %119 = sbr.rel (0) target = $region65
    $region64: #{tpu_custom_call.1} parent=1 // pred_region
      %s121 = ssub.s32 1024, 1024
      %122 = vsyncadd [#allocation12], %s121
      %s123 = sshll.u32 [#allocation13], 4
      %s124 = int_to_ptr.vmem [resolvable:$true] %s123
      %129 = dma.hbm_to_vmem [thread:$0]  %s15, 1024, %s124, [#allocation12], 64, 64, 4
    $region65: #{tpu_custom_call.1} parent=1 // pred_fallthru
      _
    // Predicated region
    $region66: #{tpu_custom_call.1} parent=1 // pred_check
      _
    $region67: #{tpu_custom_call.1} parent=1 // pred_check_branch
      %131 = sbr.rel (0) target = $region69
    $region68: #{tpu_custom_call.1} parent=1 // pred_region
      _
    $region69: #{tpu_custom_call.1} parent=1 // pred_fallthru
      _
    // Predicated region
    $region70: #{tpu_custom_call.1} parent=1 // pred_check
      _
    $region71: #{tpu_custom_call.1} parent=1 // pred_check_branch
      %133 = sbr.rel (0) target = $region73
    $region72: #{tpu_custom_call.1} parent=1 // pred_region
      %134 = dma.done [#allocation3], 64
    $region73: #{tpu_custom_call.1} parent=1 // pred_fallthru
      _
    // Predicated region
    $region74: #{tpu_custom_call.1} parent=1 // pred_check
      _
    $region75: #{tpu_custom_call.1} parent=1 // pred_check_branch
      %136 = sbr.rel (0) target = $region77
    $region76: #{tpu_custom_call.1} parent=1 // pred_region
      %137 = dma.done [#allocation6], 1024
    $region77: #{tpu_custom_call.1} parent=1 // pred_fallthru
      _
    // Predicated region
    $region78: #{tpu_custom_call.1} parent=1 // pred_check
      _
    $region79: #{tpu_custom_call.1} parent=1 // pred_check_branch
      %139 = sbr.rel (0) target = $region81
    $region80: #{tpu_custom_call.1} parent=1 // pred_region
      %140 = dma.done [#allocation6], 1024
    $region81: #{tpu_custom_call.1} parent=1 // pred_fallthru
      _
    // Predicated region
    $region82: #{tpu_custom_call.1} parent=1 // pred_check
      _
    $region83: #{tpu_custom_call.1} parent=1 // pred_check_branch
      %142 = sbr.rel (0) target = $region85
    $region84: #{tpu_custom_call.1} parent=1 // pred_region
      %143 = dma.done [#allocation9], 1024
    $region85: #{tpu_custom_call.1} parent=1 // pred_fallthru
      _
    // Predicated region
    $region86: #{tpu_custom_call.1} parent=1 // pred_check
      _
    $region87: #{tpu_custom_call.1} parent=1 // pred_check_branch
      %145 = sbr.rel (0) target = $region89
    $region88: #{tpu_custom_call.1} parent=1 // pred_region
      %146 = dma.done [#allocation9], 1024
    $region89: #{tpu_custom_call.1} parent=1 // pred_fallthru
      _
    // Predicated region
    $region90: #{tpu_custom_call.1} parent=1 // pred_check
      _
    $region91: #{tpu_custom_call.1} parent=1 // pred_check_branch
      %148 = sbr.rel (0) target = $region93
    $region92: #{tpu_custom_call.1} parent=1 // pred_region
      %149 = dma.done [#allocation12], 1024
    $region93: #{tpu_custom_call.1} parent=1 // pred_fallthru
      _
    // Predicated region
    $region94: #{tpu_custom_call.1} parent=1 // pred_check
      _
    $region95: #{tpu_custom_call.1} parent=1 // pred_check_branch
      %151 = sbr.rel (0) target = $region97
    $region96: #{tpu_custom_call.1} parent=1 // pred_region
      %152 = dma.done [#allocation12], 1024
    $region97: #{tpu_custom_call.1} parent=1 // pred_fallthru
      _
    %v154 = vld [vmem:[#allocation2] sm:$0xf]
    %v155 = vld [vmem:[#allocation5] sm:$0xf]
    %v156 = vld [vmem:[#allocation5 + $0x4] sm:$0xf]
    %v157 = vld [vmem:[#allocation5 + $0x8] sm:$0xf]
    %v158 = vld [vmem:[#allocation5 + $0xc] sm:$0xf]
    %v159 = vld [vmem:[#allocation5 + $0x10] sm:$0xf]
    %v160 = vld [vmem:[#allocation5 + $0x14] sm:$0xf]
    %v161 = vld [vmem:[#allocation5 + $0x18] sm:$0xf]
    %v162 = vld [vmem:[#allocation5 + $0x1c] sm:$0xf]
    %v163 = vld [vmem:[#allocation5 + $0x20] sm:$0xf]
    %v164 = vld [vmem:[#allocation5 + $0x24] sm:$0xf]
    %v165 = vld [vmem:[#allocation5 + $0x28] sm:$0xf]
    %v166 = vld [vmem:[#allocation5 + $0x2c] sm:$0xf]
    %v167 = vld [vmem:[#allocation5 + $0x30] sm:$0xf]
    %v168 = vld [vmem:[#allocation5 + $0x34] sm:$0xf]
    %v169 = vld [vmem:[#allocation5 + $0x38] sm:$0xf]
    %v170 = vld [vmem:[#allocation5 + $0x3c] sm:$0xf]
    %v171 = vld [vmem:[%s2] sm:$0x1]
    %v173 = vlaneseq
    %v174 = vshrl.u32 %v173, 7
    %v175 = vsub.s32 0, %v174
    %v176 = vrot.slane %v171, %v175
    %v194 = vunpack.c.l.b16 %v155
    %v195 = vunpack.c.l.b16 %v156
    %v196 = vunpack.c.l.b16 %v157
    %v197 = vunpack.c.l.b16 %v158
    %v198 = vunpack.c.l.b16 %v159
    %v199 = vunpack.c.l.b16 %v160
    %v200 = vunpack.c.l.b16 %v161
    %v201 = vunpack.c.l.b16 %v162
    %v202 = vunpack.c.l.b16 %v163
    %v203 = vunpack.c.l.b16 %v164
    %v204 = vunpack.c.l.b16 %v165
    %v205 = vunpack.c.l.b16 %v166
    %v206 = vunpack.c.l.b16 %v167
    %v207 = vunpack.c.l.b16 %v168
    %v208 = vunpack.c.l.b16 %v169
    %v209 = vunpack.c.l.b16 %v170
    %v210 = vpack.c.b16 %v195, %v194
    %v211 = vpack.c.b16 %v197, %v196
    %v212 = vpack.c.b16 %v199, %v198
    %v213 = vpack.c.b16 %v201, %v200
    %v214 = vpack.c.b16 %v203, %v202
    %v215 = vpack.c.b16 %v205, %v204
    %v216 = vpack.c.b16 %v207, %v206
    %v217 = vpack.c.b16 %v209, %v208
    %226 = vmatprep.subr.bf16.mxu0 0
    %227 = vmatpush1.bf16.msra.mxu0 %v210
    %228 = vmatprep.subr.bf16.mxu0 0
    %229 = vmatpush1.bf16.msra.mxu0 %v211
    %230 = vmatprep.subr.bf16.mxu0 0
    %231 = vmatpush1.bf16.msra.mxu0 %v212
    %232 = vmatprep.subr.bf16.mxu0 0
    %233 = vmatpush1.bf16.msra.mxu0 %v213
    %234 = vmatprep.subr.bf16.mxu0 0
    %235 = vmatpush1.bf16.msra.mxu0 %v214
    %236 = vmatprep.subr.bf16.mxu0 0
    %237 = vmatpush1.bf16.msra.mxu0 %v215
    %238 = vmatprep.subr.bf16.mxu0 0
    %239 = vmatpush1.bf16.msra.mxu0 %v216
    %240 = vmatprep.subr.bf16.mxu0 0
    %241 = vmatpush1.bf16.msra.mxu0 %v217
    %242 = vmatprep.subr.bf16.mxu0 0
    %243 = vmatpush1.bf16.msra.mxu0 0
    %244 = vmatprep.subr.bf16.mxu0 0
    %245 = vmatpush1.bf16.msra.mxu0 0
    %246 = vmatprep.subr.bf16.mxu0 0
    %247 = vmatpush1.bf16.msra.mxu0 0
    %248 = vmatprep.subr.bf16.mxu0 0
    %249 = vmatpush1.bf16.msra.mxu0 0
    %250 = vmatprep.subr.bf16.mxu0 0
    %251 = vmatpush1.bf16.msra.mxu0 0
    %252 = vmatprep.subr.bf16.mxu0 0
    %253 = vmatpush1.bf16.msra.mxu0 0
    %254 = vmatprep.subr.bf16.mxu0 0
    %255 = vmatpush1.bf16.msra.mxu0 0
    %256 = vmatprep.subr.bf16.mxu0 0
    %257 = vmatpush1.bf16.msra.mxu0 0
    %258 = vmatprep.mubr.bf16.mxu0 0
    %259 = vmatmul.mubr.bf16.gmra.mrb[0].mxu0 %v154
    %v260 = vpop.f32.mrb[0].mxu0
    %v261 = vadd.f32 %v176, %v260
    %v262 = vpop.f32.mrb[0].mxu0
    %v263 = vpop.f32.mrb[0].mxu0
    %v264 = vpop.f32.mrb[0].mxu0
    %265 = vdwg.mxu0
    %266 = vadd.xlane.f32.xlu0 %v261
    %v267 = vpop.xlane.xlu0 %266
    %v268 = vmul.f32 %v267, 0.03125
    %v269 = vmul.f32 %v261, %v261
    %270 = vadd.xlane.f32.xlu0 %v269
    %v271 = vpop.xlane.xlu0 %270
    %v272 = vmul.f32 %v271, 0.03125
    %v273 = vmul.f32 %v268, %v268
    %v274 = vsub.f32 %v272, %v273
    %v275 = vmax.f32 %v274, 0.0
    %v276 = vsub.f32 %v261, %v268
    %v277 = vadd.f32 %v275, 1e-05
    %v278 = vrsqrt.pop %v277
    %v279 = vmul.f32 %v276, %v278
    %v280 = vld [vmem:[%s3] sm:$0x1]
    %v282 = vlaneseq
    %v283 = vshrl.u32 %v282, 7
    %v284 = vsub.s32 0, %v283
    %v285 = vrot.slane %v280, %v284
    %v287 = vmul.f32 %v279, %v285
    %v288 = vld [vmem:[%s4] sm:$0x1]
    %v290 = vlaneseq
    %v291 = vshrl.u32 %v290, 7
    %v292 = vsub.s32 0, %v291
    %v293 = vrot.slane %v288, %v292
    %v295 = vadd.f32 %v287, %v293
    %v296 = vtanh.pop %v295
    %v297 = vpack.c.bf16 %v296, %v296
    %v298 = vld [vmem:[#allocation7] sm:$0xf]
    %v299 = vld [vmem:[#allocation7 + $0x4] sm:$0xf]
    %v300 = vld [vmem:[#allocation7 + $0x8] sm:$0xf]
    %v301 = vld [vmem:[#allocation7 + $0xc] sm:$0xf]
    %v302 = vld [vmem:[#allocation7 + $0x10] sm:$0xf]
    %v303 = vld [vmem:[#allocation7 + $0x14] sm:$0xf]
    %v304 = vld [vmem:[#allocation7 + $0x18] sm:$0xf]
    %v305 = vld [vmem:[#allocation7 + $0x1c] sm:$0xf]
    %v306 = vld [vmem:[#allocation7 + $0x20] sm:$0xf]
    %v307 = vld [vmem:[#allocation7 + $0x24] sm:$0xf]
    %v308 = vld [vmem:[#allocation7 + $0x28] sm:$0xf]
    %v309 = vld [vmem:[#allocation7 + $0x2c] sm:$0xf]
    %v310 = vld [vmem:[#allocation7 + $0x30] sm:$0xf]
    %v311 = vld [vmem:[#allocation7 + $0x34] sm:$0xf]
    %v312 = vld [vmem:[#allocation7 + $0x38] sm:$0xf]
    %v313 = vld [vmem:[#allocation7 + $0x3c] sm:$0xf]
    %v314 = vld [vmem:[%s6] sm:$0x1]
    %v316 = vlaneseq
    %v317 = vshrl.u32 %v316, 7
    %v318 = vsub.s32 0, %v317
    %v319 = vrot.slane %v314, %v318
    %v337 = vunpack.c.l.b16 %v298
    %v338 = vunpack.c.l.b16 %v299
    %v339 = vunpack.c.l.b16 %v300
    %v340 = vunpack.c.l.b16 %v301
    %v341 = vunpack.c.l.b16 %v302
    %v342 = vunpack.c.l.b16 %v303
    %v343 = vunpack.c.l.b16 %v304
    %v344 = vunpack.c.l.b16 %v305
    %v345 = vunpack.c.l.b16 %v306
    %v346 = vunpack.c.l.b16 %v307
    %v347 = vunpack.c.l.b16 %v308
    %v348 = vunpack.c.l.b16 %v309
    %v349 = vunpack.c.l.b16 %v310
    %v350 = vunpack.c.l.b16 %v311
    %v351 = vunpack.c.l.b16 %v312
    %v352 = vunpack.c.l.b16 %v313
    %v353 = vpack.c.b16 %v338, %v337
    %v354 = vpack.c.b16 %v340, %v339
    %v355 = vpack.c.b16 %v342, %v341
    %v356 = vpack.c.b16 %v344, %v343
    %v357 = vpack.c.b16 %v346, %v345
    %v358 = vpack.c.b16 %v348, %v347
    %v359 = vpack.c.b16 %v350, %v349
    %v360 = vpack.c.b16 %v352, %v351
    %369 = vmatprep.subr.bf16.mxu0 0
    %370 = vmatpush1.bf16.msra.mxu0 %v353
    %371 = vmatprep.subr.bf16.mxu0 0
    %372 = vmatpush1.bf16.msra.mxu0 %v354
    %373 = vmatprep.subr.bf16.mxu0 0
    %374 = vmatpush1.bf16.msra.mxu0 %v355
    %375 = vmatprep.subr.bf16.mxu0 0
    %376 = vmatpush1.bf16.msra.mxu0 %v356
    %377 = vmatprep.subr.bf16.mxu0 0
    %378 = vmatpush1.bf16.msra.mxu0 %v357
    %379 = vmatprep.subr.bf16.mxu0 0
    %380 = vmatpush1.bf16.msra.mxu0 %v358
    %381 = vmatprep.subr.bf16.mxu0 0
    %382 = vmatpush1.bf16.msra.mxu0 %v359
    %383 = vmatprep.subr.bf16.mxu0 0
    %384 = vmatpush1.bf16.msra.mxu0 %v360
    %385 = vmatprep.subr.bf16.mxu0 0
    %386 = vmatpush1.bf16.msra.mxu0 0
    %387 = vmatprep.subr.bf16.mxu0 0
    %388 = vmatpush1.bf16.msra.mxu0 0
    %389 = vmatprep.subr.bf16.mxu0 0
    %390 = vmatpush1.bf16.msra.mxu0 0
    %391 = vmatprep.subr.bf16.mxu0 0
    %392 = vmatpush1.bf16.msra.mxu0 0
    %393 = vmatprep.subr.bf16.mxu0 0
    %394 = vmatpush1.bf16.msra.mxu0 0
    %395 = vmatprep.subr.bf16.mxu0 0
    %396 = vmatpush1.bf16.msra.mxu0 0
    %397 = vmatprep.subr.bf16.mxu0 0
    %398 = vmatpush1.bf16.msra.mxu0 0
    %399 = vmatprep.subr.bf16.mxu0 0
    %400 = vmatpush1.bf16.msra.mxu0 0
    %401 = vmatprep.mubr.bf16.mxu0 0
    %402 = vmatmul.mubr.bf16.gmra.mrb[0].mxu0 %v297
    %v403 = vpop.f32.mrb[0].mxu0
    %v404 = vadd.f32 %v319, %v403
    %v405 = vpop.f32.mrb[0].mxu0
    %v406 = vpop.f32.mrb[0].mxu0
    %v407 = vpop.f32.mrb[0].mxu0
    %408 = vdwg.mxu0
    %v409 = vmax.f32 %v404, 0.0
    %v410 = vpack.c.bf16 %v409, %v409
    %v411 = vld [vmem:[#allocation8] sm:$0xf]
    %v412 = vld [vmem:[#allocation8 + $0x4] sm:$0xf]
    %v413 = vld [vmem:[#allocation8 + $0x8] sm:$0xf]
    %v414 = vld [vmem:[#allocation8 + $0xc] sm:$0xf]
    %v415 = vld [vmem:[#allocation8 + $0x10] sm:$0xf]
    %v416 = vld [vmem:[#allocation8 + $0x14] sm:$0xf]
    %v417 = vld [vmem:[#allocation8 + $0x18] sm:$0xf]
    %v418 = vld [vmem:[#allocation8 + $0x1c] sm:$0xf]
    %v419 = vld [vmem:[#allocation8 + $0x20] sm:$0xf]
    %v420 = vld [vmem:[#allocation8 + $0x24] sm:$0xf]
    %v421 = vld [vmem:[#allocation8 + $0x28] sm:$0xf]
    %v422 = vld [vmem:[#allocation8 + $0x2c] sm:$0xf]
    %v423 = vld [vmem:[#allocation8 + $0x30] sm:$0xf]
    %v424 = vld [vmem:[#allocation8 + $0x34] sm:$0xf]
    %v425 = vld [vmem:[#allocation8 + $0x38] sm:$0xf]
    %v426 = vld [vmem:[#allocation8 + $0x3c] sm:$0xf]
    %v427 = vld [vmem:[%s8] sm:$0x1]
    %v429 = vlaneseq
    %v430 = vshrl.u32 %v429, 7
    %v431 = vsub.s32 0, %v430
    %v432 = vrot.slane %v427, %v431
    %v450 = vunpack.c.l.b16 %v411
    %v451 = vunpack.c.l.b16 %v412
    %v452 = vunpack.c.l.b16 %v413
    %v453 = vunpack.c.l.b16 %v414
    %v454 = vunpack.c.l.b16 %v415
    %v455 = vunpack.c.l.b16 %v416
    %v456 = vunpack.c.l.b16 %v417
    %v457 = vunpack.c.l.b16 %v418
    %v458 = vunpack.c.l.b16 %v419
    %v459 = vunpack.c.l.b16 %v420
    %v460 = vunpack.c.l.b16 %v421
    %v461 = vunpack.c.l.b16 %v422
    %v462 = vunpack.c.l.b16 %v423
    %v463 = vunpack.c.l.b16 %v424
    %v464 = vunpack.c.l.b16 %v425
    %v465 = vunpack.c.l.b16 %v426
    %v466 = vpack.c.b16 %v451, %v450
    %v467 = vpack.c.b16 %v453, %v452
    %v468 = vpack.c.b16 %v455, %v454
    %v469 = vpack.c.b16 %v457, %v456
    %v470 = vpack.c.b16 %v459, %v458
    %v471 = vpack.c.b16 %v461, %v460
    %v472 = vpack.c.b16 %v463, %v462
    %v473 = vpack.c.b16 %v465, %v464
    %482 = vmatprep.subr.bf16.mxu0 0
    %483 = vmatpush1.bf16.msra.mxu0 %v466
    %484 = vmatprep.subr.bf16.mxu0 0
    %485 = vmatpush1.bf16.msra.mxu0 %v467
    %486 = vmatprep.subr.bf16.mxu0 0
    %487 = vmatpush1.bf16.msra.mxu0 %v468
    %488 = vmatprep.subr.bf16.mxu0 0
    %489 = vmatpush1.bf16.msra.mxu0 %v469
    %490 = vmatprep.subr.bf16.mxu0 0
    %491 = vmatpush1.bf16.msra.mxu0 %v470
    %492 = vmatprep.subr.bf16.mxu0 0
    %493 = vmatpush1.bf16.msra.mxu0 %v471
    %494 = vmatprep.subr.bf16.mxu0 0
    %495 = vmatpush1.bf16.msra.mxu0 %v472
    %496 = vmatprep.subr.bf16.mxu0 0
    %497 = vmatpush1.bf16.msra.mxu0 %v473
    %498 = vmatprep.subr.bf16.mxu0 0
    %499 = vmatpush1.bf16.msra.mxu0 0
    %500 = vmatprep.subr.bf16.mxu0 0
    %501 = vmatpush1.bf16.msra.mxu0 0
    %502 = vmatprep.subr.bf16.mxu0 0
    %503 = vmatpush1.bf16.msra.mxu0 0
    %504 = vmatprep.subr.bf16.mxu0 0
    %505 = vmatpush1.bf16.msra.mxu0 0
    %506 = vmatprep.subr.bf16.mxu0 0
    %507 = vmatpush1.bf16.msra.mxu0 0
    %508 = vmatprep.subr.bf16.mxu0 0
    %509 = vmatpush1.bf16.msra.mxu0 0
    %510 = vmatprep.subr.bf16.mxu0 0
    %511 = vmatpush1.bf16.msra.mxu0 0
    %512 = vmatprep.subr.bf16.mxu0 0
    %513 = vmatpush1.bf16.msra.mxu0 0
    %514 = vmatprep.mubr.bf16.mxu0 0
    %515 = vmatmul.mubr.bf16.gmra.mrb[0].mxu0 %v410
    %v516 = vpop.f32.mrb[0].mxu0
    %v517 = vadd.f32 %v432, %v516
    %v518 = vpop.f32.mrb[0].mxu0
    %v519 = vpop.f32.mrb[0].mxu0
    %v520 = vpop.f32.mrb[0].mxu0
    %521 = vdwg.mxu0
    %522 = vst [vmem:[#allocation14] sm:$0xff] %v517
    %v523 = vld [vmem:[#allocation10] sm:$0xf]
    %v524 = vld [vmem:[#allocation10 + $0x4] sm:$0xf]
    %v525 = vld [vmem:[#allocation10 + $0x8] sm:$0xf]
    %v526 = vld [vmem:[#allocation10 + $0xc] sm:$0xf]
    %v527 = vld [vmem:[#allocation10 + $0x10] sm:$0xf]
    %v528 = vld [vmem:[#allocation10 + $0x14] sm:$0xf]
    %v529 = vld [vmem:[#allocation10 + $0x18] sm:$0xf]
    %v530 = vld [vmem:[#allocation10 + $0x1c] sm:$0xf]
    %v531 = vld [vmem:[#allocation10 + $0x20] sm:$0xf]
    %v532 = vld [vmem:[#allocation10 + $0x24] sm:$0xf]
    %v533 = vld [vmem:[#allocation10 + $0x28] sm:$0xf]
    %v534 = vld [vmem:[#allocation10 + $0x2c] sm:$0xf]
    %v535 = vld [vmem:[#allocation10 + $0x30] sm:$0xf]
    %v536 = vld [vmem:[#allocation10 + $0x34] sm:$0xf]
    %v537 = vld [vmem:[#allocation10 + $0x38] sm:$0xf]
    %v538 = vld [vmem:[#allocation10 + $0x3c] sm:$0xf]
    %v539 = vld [vmem:[%s10] sm:$0x1]
    %v541 = vlaneseq
    %v542 = vshrl.u32 %v541, 7
    %v543 = vsub.s32 0, %v542
    %v544 = vrot.slane %v539, %v543
    %v562 = vunpack.c.l.b16 %v523
    %v563 = vunpack.c.l.b16 %v524
    %v564 = vunpack.c.l.b16 %v525
    %v565 = vunpack.c.l.b16 %v526
    %v566 = vunpack.c.l.b16 %v527
    %v567 = vunpack.c.l.b16 %v528
    %v568 = vunpack.c.l.b16 %v529
    %v569 = vunpack.c.l.b16 %v530
    %v570 = vunpack.c.l.b16 %v531
    %v571 = vunpack.c.l.b16 %v532
    %v572 = vunpack.c.l.b16 %v533
    %v573 = vunpack.c.l.b16 %v534
    %v574 = vunpack.c.l.b16 %v535
    %v575 = vunpack.c.l.b16 %v536
    %v576 = vunpack.c.l.b16 %v537
    %v577 = vunpack.c.l.b16 %v538
    %v578 = vpack.c.b16 %v563, %v562
    %v579 = vpack.c.b16 %v565, %v564
    %v580 = vpack.c.b16 %v567, %v566
    %v581 = vpack.c.b16 %v569, %v568
    %v582 = vpack.c.b16 %v571, %v570
    %v583 = vpack.c.b16 %v573, %v572
    %v584 = vpack.c.b16 %v575, %v574
    %v585 = vpack.c.b16 %v577, %v576
    %594 = vmatprep.subr.bf16.mxu0 0
    %595 = vmatpush1.bf16.msra.mxu0 %v578
    %596 = vmatprep.subr.bf16.mxu0 0
    %597 = vmatpush1.bf16.msra.mxu0 %v579
    %598 = vmatprep.subr.bf16.mxu0 0
    %599 = vmatpush1.bf16.msra.mxu0 %v580
    %600 = vmatprep.subr.bf16.mxu0 0
    %601 = vmatpush1.bf16.msra.mxu0 %v581
    %602 = vmatprep.subr.bf16.mxu0 0
    %603 = vmatpush1.bf16.msra.mxu0 %v582
    %604 = vmatprep.subr.bf16.mxu0 0
    %605 = vmatpush1.bf16.msra.mxu0 %v583
    %606 = vmatprep.subr.bf16.mxu0 0
    %607 = vmatpush1.bf16.msra.mxu0 %v584
    %608 = vmatprep.subr.bf16.mxu0 0
    %609 = vmatpush1.bf16.msra.mxu0 %v585
    %610 = vmatprep.subr.bf16.mxu0 0
    %611 = vmatpush1.bf16.msra.mxu0 0
    %612 = vmatprep.subr.bf16.mxu0 0
    %613 = vmatpush1.bf16.msra.mxu0 0
    %614 = vmatprep.subr.bf16.mxu0 0
    %615 = vmatpush1.bf16.msra.mxu0 0
    %616 = vmatprep.subr.bf16.mxu0 0
    %617 = vmatpush1.bf16.msra.mxu0 0
    %618 = vmatprep.subr.bf16.mxu0 0
    %619 = vmatpush1.bf16.msra.mxu0 0
    %620 = vmatprep.subr.bf16.mxu0 0
    %621 = vmatpush1.bf16.msra.mxu0 0
    %622 = vmatprep.subr.bf16.mxu0 0
    %623 = vmatpush1.bf16.msra.mxu0 0
    %624 = vmatprep.subr.bf16.mxu0 0
    %625 = vmatpush1.bf16.msra.mxu0 0
    %626 = vmatprep.mubr.bf16.mxu0 0
    %627 = vmatmul.mubr.bf16.gmra.mrb[0].mxu0 %v154
    %v628 = vpop.f32.mrb[0].mxu0
    %v629 = vadd.f32 %v544, %v628
    %v630 = vpop.f32.mrb[0].mxu0
    %v631 = vpop.f32.mrb[0].mxu0
    %v632 = vpop.f32.mrb[0].mxu0
    %633 = vdwg.mxu0
    %634 = vadd.xlane.f32.xlu0 %v629
    %v635 = vpop.xlane.xlu0 %634
    %v636 = vmul.f32 %v635, 0.03125
    %v637 = vmul.f32 %v629, %v629
    %638 = vadd.xlane.f32.xlu0 %v637
    %v639 = vpop.xlane.xlu0 %638
    %v640 = vmul.f32 %v639, 0.03125
    %v641 = vmul.f32 %v636, %v636
    %v642 = vsub.f32 %v640, %v641
    %v643 = vmax.f32 %v642, 0.0
    %v644 = vsub.f32 %v629, %v636
    %v645 = vadd.f32 %v643, 1e-05
    %v646 = vrsqrt.pop %v645
    %v647 = vmul.f32 %v644, %v646
    %v648 = vld [vmem:[%s11] sm:$0x1]
    %v650 = vlaneseq
    %v651 = vshrl.u32 %v650, 7
    %v652 = vsub.s32 0, %v651
    %v653 = vrot.slane %v648, %v652
    %v655 = vmul.f32 %v647, %v653
    %v656 = vld [vmem:[%s12] sm:$0x1]
    %v658 = vlaneseq
    %v659 = vshrl.u32 %v658, 7
    %v660 = vsub.s32 0, %v659
    %v661 = vrot.slane %v656, %v660
    %v663 = vadd.f32 %v655, %v661
    %v664 = vtanh.pop %v663
    %v665 = vpack.c.bf16 %v664, %v664
    %v666 = vld [vmem:[#allocation11] sm:$0xf]
    %v667 = vld [vmem:[#allocation11 + $0x4] sm:$0xf]
    %v668 = vld [vmem:[#allocation11 + $0x8] sm:$0xf]
    %v669 = vld [vmem:[#allocation11 + $0xc] sm:$0xf]
    %v670 = vld [vmem:[#allocation11 + $0x10] sm:$0xf]
    %v671 = vld [vmem:[#allocation11 + $0x14] sm:$0xf]
    %v672 = vld [vmem:[#allocation11 + $0x18] sm:$0xf]
    %v673 = vld [vmem:[#allocation11 + $0x1c] sm:$0xf]
    %v674 = vld [vmem:[#allocation11 + $0x20] sm:$0xf]
    %v675 = vld [vmem:[#allocation11 + $0x24] sm:$0xf]
    %v676 = vld [vmem:[#allocation11 + $0x28] sm:$0xf]
    %v677 = vld [vmem:[#allocation11 + $0x2c] sm:$0xf]
    %v678 = vld [vmem:[#allocation11 + $0x30] sm:$0xf]
    %v679 = vld [vmem:[#allocation11 + $0x34] sm:$0xf]
    %v680 = vld [vmem:[#allocation11 + $0x38] sm:$0xf]
    %v681 = vld [vmem:[#allocation11 + $0x3c] sm:$0xf]
    %v682 = vld [vmem:[%s14] sm:$0x1]
    %v684 = vlaneseq
    %v685 = vshrl.u32 %v684, 7
    %v686 = vsub.s32 0, %v685
    %v687 = vrot.slane %v682, %v686
    %v705 = vunpack.c.l.b16 %v666
    %v706 = vunpack.c.l.b16 %v667
    %v707 = vunpack.c.l.b16 %v668
    %v708 = vunpack.c.l.b16 %v669
    %v709 = vunpack.c.l.b16 %v670
    %v710 = vunpack.c.l.b16 %v671
    %v711 = vunpack.c.l.b16 %v672
    %v712 = vunpack.c.l.b16 %v673
    %v713 = vunpack.c.l.b16 %v674
    %v714 = vunpack.c.l.b16 %v675
    %v715 = vunpack.c.l.b16 %v676
    %v716 = vunpack.c.l.b16 %v677
    %v717 = vunpack.c.l.b16 %v678
    %v718 = vunpack.c.l.b16 %v679
    %v719 = vunpack.c.l.b16 %v680
    %v720 = vunpack.c.l.b16 %v681
    %v721 = vpack.c.b16 %v706, %v705
    %v722 = vpack.c.b16 %v708, %v707
    %v723 = vpack.c.b16 %v710, %v709
    %v724 = vpack.c.b16 %v712, %v711
    %v725 = vpack.c.b16 %v714, %v713
    %v726 = vpack.c.b16 %v716, %v715
    %v727 = vpack.c.b16 %v718, %v717
    %v728 = vpack.c.b16 %v720, %v719
    %737 = vmatprep.subr.bf16.mxu0 0
    %738 = vmatpush1.bf16.msra.mxu0 %v721
    %739 = vmatprep.subr.bf16.mxu0 0
    %740 = vmatpush1.bf16.msra.mxu0 %v722
    %741 = vmatprep.subr.bf16.mxu0 0
    %742 = vmatpush1.bf16.msra.mxu0 %v723
    %743 = vmatprep.subr.bf16.mxu0 0
    %744 = vmatpush1.bf16.msra.mxu0 %v724
    %745 = vmatprep.subr.bf16.mxu0 0
    %746 = vmatpush1.bf16.msra.mxu0 %v725
    %747 = vmatprep.subr.bf16.mxu0 0
    %748 = vmatpush1.bf16.msra.mxu0 %v726
    %749 = vmatprep.subr.bf16.mxu0 0
    %750 = vmatpush1.bf16.msra.mxu0 %v727
    %751 = vmatprep.subr.bf16.mxu0 0
    %752 = vmatpush1.bf16.msra.mxu0 %v728
    %753 = vmatprep.subr.bf16.mxu0 0
    %754 = vmatpush1.bf16.msra.mxu0 0
    %755 = vmatprep.subr.bf16.mxu0 0
    %756 = vmatpush1.bf16.msra.mxu0 0
    %757 = vmatprep.subr.bf16.mxu0 0
    %758 = vmatpush1.bf16.msra.mxu0 0
    %759 = vmatprep.subr.bf16.mxu0 0
    %760 = vmatpush1.bf16.msra.mxu0 0
    %761 = vmatprep.subr.bf16.mxu0 0
    %762 = vmatpush1.bf16.msra.mxu0 0
    %763 = vmatprep.subr.bf16.mxu0 0
    %764 = vmatpush1.bf16.msra.mxu0 0
    %765 = vmatprep.subr.bf16.mxu0 0
    %766 = vmatpush1.bf16.msra.mxu0 0
    %767 = vmatprep.subr.bf16.mxu0 0
    %768 = vmatpush1.bf16.msra.mxu0 0
    %769 = vmatprep.mubr.bf16.mxu0 0
    %770 = vmatmul.mubr.bf16.gmra.mrb[0].mxu0 %v665
    %v771 = vpop.f32.mrb[0].mxu0
    %v772 = vadd.f32 %v687, %v771
    %v773 = vpop.f32.mrb[0].mxu0
    %v774 = vpop.f32.mrb[0].mxu0
    %v775 = vpop.f32.mrb[0].mxu0
    %776 = vdwg.mxu0
    %v777 = vmax.f32 %v772, 0.0
    %v778 = vpack.c.bf16 %v777, %v777
    %v779 = vld [vmem:[#allocation13] sm:$0xf]
    %v780 = vld [vmem:[#allocation13 + $0x4] sm:$0xf]
    %v781 = vld [vmem:[#allocation13 + $0x8] sm:$0xf]
    %v782 = vld [vmem:[#allocation13 + $0xc] sm:$0xf]
    %v783 = vld [vmem:[#allocation13 + $0x10] sm:$0xf]
    %v784 = vld [vmem:[#allocation13 + $0x14] sm:$0xf]
    %v785 = vld [vmem:[#allocation13 + $0x18] sm:$0xf]
    %v786 = vld [vmem:[#allocation13 + $0x1c] sm:$0xf]
    %v787 = vld [vmem:[#allocation13 + $0x20] sm:$0xf]
    %v788 = vld [vmem:[#allocation13 + $0x24] sm:$0xf]
    %v789 = vld [vmem:[#allocation13 + $0x28] sm:$0xf]
    %v790 = vld [vmem:[#allocation13 + $0x2c] sm:$0xf]
    %v791 = vld [vmem:[#allocation13 + $0x30] sm:$0xf]
    %v792 = vld [vmem:[#allocation13 + $0x34] sm:$0xf]
    %v793 = vld [vmem:[#allocation13 + $0x38] sm:$0xf]
    %v794 = vld [vmem:[#allocation13 + $0x3c] sm:$0xf]
    %v795 = vld [vmem:[%s16] sm:$0x1]
    %v797 = vlaneseq
    %v798 = vshrl.u32 %v797, 7
    %v799 = vsub.s32 0, %v798
    %v800 = vrot.slane %v795, %v799
    %v818 = vunpack.c.l.b16 %v779
    %v819 = vunpack.c.l.b16 %v780
    %v820 = vunpack.c.l.b16 %v781
    %v821 = vunpack.c.l.b16 %v782
    %v822 = vunpack.c.l.b16 %v783
    %v823 = vunpack.c.l.b16 %v784
    %v824 = vunpack.c.l.b16 %v785
    %v825 = vunpack.c.l.b16 %v786
    %v826 = vunpack.c.l.b16 %v787
    %v827 = vunpack.c.l.b16 %v788
    %v828 = vunpack.c.l.b16 %v789
    %v829 = vunpack.c.l.b16 %v790
    %v830 = vunpack.c.l.b16 %v791
    %v831 = vunpack.c.l.b16 %v792
    %v832 = vunpack.c.l.b16 %v793
    %v833 = vunpack.c.l.b16 %v794
    %v834 = vpack.c.b16 %v819, %v818
    %v835 = vpack.c.b16 %v821, %v820
    %v836 = vpack.c.b16 %v823, %v822
    %v837 = vpack.c.b16 %v825, %v824
    %v838 = vpack.c.b16 %v827, %v826
    %v839 = vpack.c.b16 %v829, %v828
    %v840 = vpack.c.b16 %v831, %v830
    %v841 = vpack.c.b16 %v833, %v832
    %850 = vmatprep.subr.bf16.mxu0 0
    %851 = vmatpush1.bf16.msra.mxu0 %v834
    %852 = vmatprep.subr.bf16.mxu0 0
    %853 = vmatpush1.bf16.msra.mxu0 %v835
    %854 = vmatprep.subr.bf16.mxu0 0
    %855 = vmatpush1.bf16.msra.mxu0 %v836
    %856 = vmatprep.subr.bf16.mxu0 0
    %857 = vmatpush1.bf16.msra.mxu0 %v837
    %858 = vmatprep.subr.bf16.mxu0 0
    %859 = vmatpush1.bf16.msra.mxu0 %v838
    %860 = vmatprep.subr.bf16.mxu0 0
    %861 = vmatpush1.bf16.msra.mxu0 %v839
    %862 = vmatprep.subr.bf16.mxu0 0
    %863 = vmatpush1.bf16.msra.mxu0 %v840
    %864 = vmatprep.subr.bf16.mxu0 0
    %865 = vmatpush1.bf16.msra.mxu0 %v841
    %866 = vmatprep.subr.bf16.mxu0 0
    %867 = vmatpush1.bf16.msra.mxu0 0
    %868 = vmatprep.subr.bf16.mxu0 0
    %869 = vmatpush1.bf16.msra.mxu0 0
    %870 = vmatprep.subr.bf16.mxu0 0
    %871 = vmatpush1.bf16.msra.mxu0 0
    %872 = vmatprep.subr.bf16.mxu0 0
    %873 = vmatpush1.bf16.msra.mxu0 0
    %874 = vmatprep.subr.bf16.mxu0 0
    %875 = vmatpush1.bf16.msra.mxu0 0
    %876 = vmatprep.subr.bf16.mxu0 0
    %877 = vmatpush1.bf16.msra.mxu0 0
    %878 = vmatprep.subr.bf16.mxu0 0
    %879 = vmatpush1.bf16.msra.mxu0 0
    %880 = vmatprep.subr.bf16.mxu0 0
    %881 = vmatpush1.bf16.msra.mxu0 0
    %882 = vmatprep.mubr.bf16.mxu0 0
    %883 = vmatmul.mubr.bf16.gmra.mrb[0].mxu0 %v778
    %v884 = vpop.f32.mrb[0].mxu0
    %v885 = vadd.f32 %v800, %v884
    %v886 = vpop.f32.mrb[0].mxu0
    %v887 = vpop.f32.mrb[0].mxu0
    %v888 = vpop.f32.mrb[0].mxu0
    %889 = vdwg.mxu0
    %890 = vst [vmem:[#allocation15] sm:$0xff] %v885
    // Predicated region
    $region98: #{tpu_custom_call.1} parent=1 // pred_check
      _
    $region99: #{tpu_custom_call.1} parent=1 // pred_check_branch
      %892 = sbr.rel (0) target = $region101
    $region100: #{tpu_custom_call.1} parent=1 // pred_region
      %s894 = ssub.s32 128, 128
      %895 = vsyncadd [#allocation4], %s894
      %s897 = sshll.u32 [#allocation14], 4
      %s898 = int_to_ptr.vmem [resolvable:$true] %s897
      %900 = dma.vmem_to_hbm [thread:$0]  %s898, 128, %s17, [#allocation4]
    $region101: #{tpu_custom_call.1} parent=1 // pred_fallthru
      _
    // Predicated region
    $region102: #{tpu_custom_call.1} parent=1 // pred_check
      _
    $region103: #{tpu_custom_call.1} parent=1 // pred_check_branch
      %902 = sbr.rel (0) target = $region105
    $region104: #{tpu_custom_call.1} parent=1 // pred_region
      %s904 = ssub.s32 128, 128
      %905 = vsyncadd [#allocation16], %s904
      %s907 = sshll.u32 [#allocation15], 4
      %s908 = int_to_ptr.vmem [resolvable:$true] %s907
      %910 = dma.vmem_to_hbm [thread:$0]  %s908, 128, %s18, [#allocation16]
    $region105: #{tpu_custom_call.1} parent=1 // pred_fallthru
      _
    // Predicated region
    $region106: #{tpu_custom_call.1} parent=1 // pred_check
      _
    $region107: #{tpu_custom_call.1} parent=1 // pred_check_branch
      %912 = sbr.rel (0) target = $region109
    $region108: #{tpu_custom_call.1} parent=1 // pred_region
      %913 = dma.done [#allocation4], 128
    $region109: #{tpu_custom_call.1} parent=1 // pred_fallthru
      _
    // Predicated region
    $region110: #{tpu_custom_call.1} parent=1 // pred_check
      _
    $region111: #{tpu_custom_call.1} parent=1 // pred_check_branch
      %915 = sbr.rel (0) target = $region113
    $region112: #{tpu_custom_call.1} parent=1 // pred_region
      %916 = dma.done [#allocation16], 128
    $region113: #{tpu_custom_call.1} parent=1 // pred_fallthru
      _
    %917 = vsyncpa [#allocation3], 1
    %918 = vsyncpa [#allocation6], 1
    %919 = vsyncpa [#allocation9], 1
    %920 = vsyncpa [#allocation12], 1
    %921 = vsyncpa [#allocation4], 1
    %922 = vsyncpa [#allocation16], 1

</llo_original>
